<compile_context>
chip_gen: v5e
topology: v5e:2x2
jax: 0.10.0
libtpu: 0.0.40
codegen_flags: <defaults>
</compile_context>

<pallas_src>
import functools

import jax
import jax.numpy as jnp
from jax.experimental import pallas as pl
from jax.experimental.pallas import tpu as pltpu

_BN_EPS = 1e-5


def _round_up(x, m):
    return ((x + m - 1) // m) * m


def _vmem_limit_bytes():
    """Per-generation scoped-VMEM budget (~85% of physical VMEM)."""
    try:
        cap = int(pltpu.get_tpu_info().vmem_capacity_bytes)
    except Exception:
        cap = 64 * 1024 * 1024          # v7x-safe fallback
    return int(cap * 0.85)


# ---------------------------------------------------------------------------
# Kernels
# ---------------------------------------------------------------------------

def _fused_kernel(n_rows, num_hidden, *refs):
    """Single-call fast path: full-batch BN + every layer entirely in VMEM.

    refs = (x, gamma0, beta0, [W, b, gamma, beta] * num_hidden, W_out, b_out, out)
    """
    x_ref = refs[0]
    out_ref = refs[-1]
    prm = refs[1:-1]

    def bn(z, gamma, beta):
        zm = z
        if z.shape[0] != n_rows:        # static: mask padded batch rows out of stats
            row = jax.lax.broadcasted_iota(jnp.int32, z.shape, 0)
            zm = jnp.where(row < n_rows, z, 0.0)
        inv_n = 1.0 / float(n_rows)
        mean = jnp.sum(zm, axis=0, keepdims=True) * inv_n
        var = jnp.maximum(jnp.sum(zm * zm, axis=0, keepdims=True) * inv_n
                          - mean * mean, 0.0)
        scale = gamma * jax.lax.rsqrt(var + _BN_EPS)
        return (z - mean) * scale + beta

    h = bn(x_ref[...].astype(jnp.float32), prm[0][...], prm[1][...])
    idx = 2
    for li in range(num_hidden):
        w, b, g, be = prm[idx], prm[idx + 1], prm[idx + 2], prm[idx + 3]
        idx += 4
        if li > 0:
            h = jnp.maximum(h, 0.0)
        z = jnp.dot(h.astype(w.dtype), w[...],
                    preferred_element_type=jnp.float32) + b[...]
        h = bn(z, g[...], be[...])
    h = jnp.maximum(h, 0.0)
    w_o, b_o = prm[idx], prm[idx + 1]
    out_ref[...] = jnp.dot(h.astype(w_o.dtype), w_o[...],
                           preferred_element_type=jnp.float32) + b_o[...]


def _write_stat_block(stats_ref, vals):
    """Write per-tile (sum, sumsq) partials as rows 0/1 of an (8, f) block."""
    s = jnp.sum(vals, axis=0, keepdims=True)
    sq = jnp.sum(vals * vals, axis=0, keepdims=True)
    r = jax.lax.broadcasted_iota(jnp.int32, (8, vals.shape[1]), 0)
    stats_ref[...] = jnp.where(r == 0, s, jnp.where(r == 1, sq, 0.0))


def _stats_kernel(n_rows, tile, has_pad, x_ref, stats_ref):
    """Pass 0 (tiled path): per-tile partial sum / sum-of-squares of x."""
    i = pl.program_id(0)

    def emit(masked):
        x = x_ref[...].astype(jnp.float32)
        if masked:
            row = jax.lax.broadcasted_iota(jnp.int32, x.shape, 0) + i * tile
            x = jnp.where(row < n_rows, x, 0.0)
        _write_stat_block(stats_ref, x)

    if has_pad:                         # only the LAST tile contains padded rows
        last = pl.num_programs(0) - 1

        @pl.when(i == last)
        def _():
            emit(True)

        @pl.when(i != last)
        def _():
            emit(False)
    else:
        emit(False)


def _layer_kernel(n_rows, tile, apply_relu, has_pad,
                  z_ref, scale_ref, shift_ref, w_ref, b_ref,
                  z_out_ref, stats_ref):
    """BN (pre-folded scale/shift) [-> ReLU] -> Linear, plus next-layer stat partials."""
    i = pl.program_id(0)
    h = z_ref[...].astype(jnp.float32) * scale_ref[...] + shift_ref[...]
    if apply_relu:
        h = jnp.maximum(h, 0.0)
    z_new = jnp.dot(h.astype(w_ref.dtype), w_ref[...],
                    preferred_element_type=jnp.float32) + b_ref[...]
    z_store = z_new.astype(z_out_ref.dtype)     # bf16 activation spill
    z_out_ref[...] = z_store
    z_stat = z_store.astype(jnp.float32)        # stats of what the next layer reads

    def emit(masked):
        zs = z_stat
        if masked:
            row = jax.lax.broadcasted_iota(jnp.int32, zs.shape, 0) + i * tile
            zs = jnp.where(row < n_rows, zs, 0.0)
        _write_stat_block(stats_ref, zs)

    if has_pad:
        last = pl.num_programs(0) - 1

        @pl.when(i == last)
        def _():
            emit(True)

        @pl.when(i != last)
        def _():
            emit(False)
    else:
        emit(False)


def _final_kernel(z_ref, scale_ref, shift_ref, w_ref, b_ref, out_ref):
    """ReLU(BN(z_last)) @ W_out + b_out (lane-padded output => dense stores)."""
    h = jnp.maximum(z_ref[...].astype(jnp.float32) * scale_ref[...] + shift_ref[...],
                    0.0)
    out_ref[...] = jnp.dot(h.astype(w_ref.dtype), w_ref[...],
                           preferred_element_type=jnp.float32) + b_ref[...]


# ---------------------------------------------------------------------------
# Parameter preparation (done ONCE, outside the per-forward call)
# ---------------------------------------------------------------------------

def prepare_params(params, matmul_dtype=jnp.bfloat16):
    """Pad hidden/output feature dims to multiples of 128 and pre-cast weights.

    Raw params format:
      {'bn0': (gamma, beta),                    # [f_in]
       'hidden': [(W, b, gamma, beta), ...],    # W [f_in_k, f_out_k]; BN after Linear
       'out': (W, b)}                           # W [f_last, out_dim]
    """
    f32 = jnp.float32
    g0, be0 = params["bn0"]
    prepared = {"bn0": (g0.astype(f32).reshape(1, -1),
                        be0.astype(f32).reshape(1, -1))}

    prev = g0.reshape(-1).shape[0]              # input feature dim (unpadded)
    hidden = []
    for (w, b, g, be) in params["hidden"]:
        f_out = w.shape[1]
        f_pad = _round_up(f_out, 128)
        w_p = jnp.pad(w.astype(f32),
                      ((0, prev - w.shape[0]), (0, f_pad - f_out))).astype(matmul_dtype)
        b_p = jnp.pad(b.astype(f32).reshape(1, -1), ((0, 0), (0, f_pad - f_out)))
        g_p = jnp.pad(g.astype(f32).reshape(1, -1), ((0, 0), (0, f_pad - f_out)))
        be_p = jnp.pad(be.astype(f32).reshape(1, -1), ((0, 0), (0, f_pad - f_out)))
        hidden.append((w_p, b_p, g_p, be_p))
        prev = f_pad
    prepared["hidden"] = hidden

    w_o, b_o = params["out"]
    o = w_o.shape[1]
    o_pad = _round_up(o, 128)
    w_o_p = jnp.pad(w_o.astype(f32),
                    ((0, prev - w_o.shape[0]), (0, o_pad - o))).astype(matmul_dtype)
    b_o_p = jnp.pad(b_o.astype(f32).reshape(1, -1), ((0, 0), (0, o_pad - o)))
    prepared["out"] = (w_o_p, b_o_p)
    return prepared


# ---------------------------------------------------------------------------
# Forward pass
# ---------------------------------------------------------------------------

def _fused_vmem_estimate(n, feat, params):
    max_f = max(feat)
    act = 4 * n * max_f * 4                      # a few f32 temporaries of widest layer
    io = n * (feat[0] + feat[-1]) * 4
    w_bytes = 0
    for (w, b, g, be) in params["hidden"]:
        w_bytes += w.size * w.dtype.itemsize + (b.size + g.size + be.size) * 4
    w_o, b_o = params["out"]
    w_bytes += w_o.size * w_o.dtype.itemsize + b_o.size * 4
    return act + io + w_bytes


def _auto_block_rows(feat, vmem_limit, act_dtype):
    act_bytes = jnp.dtype(act_dtype).itemsize
    w_bytes = max(fp * fn for fp, fn in zip(feat[:-1], feat[1:])) * 2
    budget = max(int(vmem_limit * 0.6) - 2 * w_bytes, 4 << 20)
    per_row = 1
    for fp, fn in zip(feat[:-1], feat[1:]):
        per_row = max(per_row,
                      2 * fp * act_bytes + 2 * fn * 4 + 6 * 4 * max(fp, fn))
    rows = max(256, min(int(budget // per_row), 4096))
    return (rows // 16) * 16


def _stats_to_scale_shift(stats, n_rows, gamma, beta):
    """Reduce per-tile partials and fold BN into per-feature scale/shift vectors."""
    s = jnp.sum(stats[:, 0, :], axis=0, keepdims=True)
    sq = jnp.sum(stats[:, 1, :], axis=0, keepdims=True)
    mean = s / n_rows
    var = jnp.maximum(sq / n_rows - mean * mean, 0.0)   # clamp f32 cancellation
    scale = gamma * jax.lax.rsqrt(var + _BN_EPS)
    shift = beta - mean * scale
    return scale, shift


def mlp_forward(x, params, *, out_dim, block_rows=None,
                act_dtype=jnp.bfloat16, force_tiled=False):
    """Mlp forward pass. `params` must come from prepare_params()."""
    n, f_in = x.shape
    x = x.astype(jnp.float32)
    f32 = jnp.float32
    vmem_limit = _vmem_limit_bytes()

    g0, be0 = params["bn0"]
    hidden = params["hidden"]
    w_out, b_out = params["out"]
    o_pad = w_out.shape[1]
    feat = [f_in] + [w.shape[1] for (w, _, _, _) in hidden] + [o_pad]

    # ---- fused single-kernel fast path (everything resident in VMEM) ----
    if (not force_tiled) and _fused_vmem_estimate(n, feat, params) <= vmem_limit // 2:
        inputs = [x, g0, be0]
        for (w, b, g, be) in hidden:
            inputs += [w, b, g, be]
        inputs += [w_out, b_out]
        out = pl.pallas_call(
            functools.partial(_fused_kernel, n, len(hidden)),
            out_shape=jax.ShapeDtypeStruct((n, o_pad), f32),
            compiler_params=pltpu.CompilerParams(vmem_limit_bytes=vmem_limit),
        )(*inputs)
        return out[:, :out_dim]

    # ---- tiled streaming path (batch grid, fully "parallel" => megacore on v7x) ----
    if block_rows is None:
        block_rows = _auto_block_rows(feat, vmem_limit, act_dtype)
    tile = max(16, (int(block_rows) // 16) * 16)        # multiple of 16 (bf16 sublanes)
    tile = min(tile, _round_up(n, 16))
    n_pad = _round_up(n, tile)
    n_tiles = n_pad // tile
    has_pad = n_pad != n
    if has_pad:
        x = jnp.pad(x, ((0, n_pad - n), (0, 0)))

    cp = pltpu.CompilerParams(dimension_semantics=("parallel",),
                              vmem_limit_bytes=vmem_limit)

    def tiled_spec(f):       # activations: streamed per batch tile
        return pl.BlockSpec((tile, f), lambda i: (i, 0))

    def resident(shape):     # weights/bias/scale/shift: constant index_map, stays in VMEM
        return pl.BlockSpec(shape, lambda i: (0, 0))

    def stats_spec(f):       # per-tile (sum, sumsq) partials; no cross-tile accumulation
        return pl.BlockSpec((None, 8, f), lambda i: (i, 0, 0))

    # pass 0: partial stats of the raw input (BatchNorm1d(input))
    stats = pl.pallas_call(
        functools.partial(_stats_kernel, n, tile, has_pad),
        grid=(n_tiles,),
        in_specs=[tiled_spec(f_in)],
        out_specs=stats_spec(f_in),
        out_shape=jax.ShapeDtypeStruct((n_tiles, 8, f_in), f32),
        compiler_params=cp,
    )(x)
    scale, shift = _stats_to_scale_shift(stats, n, g0, be0)

    # hidden layers: BN (folded scale/shift) [+ReLU] -> Linear, fused next-layer stats
    z = x
    f_prev = f_in
    for li, (w, b, g_next, be_next) in enumerate(hidden):
        f_next = w.shape[1]
        z, stats = pl.pallas_call(
            functools.partial(_layer_kernel, n, tile, li > 0, has_pad),
            grid=(n_tiles,),
            in_specs=[tiled_spec(f_prev),
                      resident((1, f_prev)), resident((1, f_prev)),
                      resident((f_prev, f_next)), resident((1, f_next))],
            out_specs=(tiled_spec(f_next), stats_spec(f_next)),
            out_shape=(jax.ShapeDtypeStruct((n_pad, f_next), act_dtype),
                       jax.ShapeDtypeStruct((n_tiles, 8, f_next), f32)),
            compiler_params=cp,
        )(z, scale, shift, w, b)
        scale, shift = _stats_to_scale_shift(stats, n, g_next, be_next)
        f_prev = f_next

    # output layer: ReLU(BN) -> Linear (lane-padded output, dense stores)
    out = pl.pallas_call(
        _final_kernel,
        grid=(n_tiles,),
        in_specs=[tiled_spec(f_prev),
                  resident((1, f_prev)), resident((1, f_prev)),
                  resident((f_prev, o_pad)), resident((1, o_pad))],
        out_specs=tiled_spec(o_pad),
        out_shape=jax.ShapeDtypeStruct((n_pad, o_pad), f32),
        compiler_params=cp,
    )(z, scale, shift, w_out, b_out)

    return out[:n, :out_dim]


# ---------------------------------------------------------------------------
# Reference + synthetic params
# ---------------------------------------------------------------------------

def mlp_reference(x, raw_params, matmul_dtype=jnp.bfloat16):
    def bn(h, g, be):
        mean = jnp.mean(h, axis=0, keepdims=True)
        var = jnp.maximum(jnp.mean(h * h, axis=0, keepdims=True) - mean * mean, 0.0)
        return (h - mean) * jax.lax.rsqrt(var + _BN_EPS) * g + be

    x = x.astype(jnp.float32)
    g0, be0 = raw_params["bn0"]
    h = bn(x, g0.reshape(1, -1), be0.reshape(1, -1))
    for (w, b, g, be) in raw_params["hidden"]:
        z = jnp.dot(h.astype(matmul_dtype), w.astype(matmul_dtype),
                    preferred_element_type=jnp.float32) + b.reshape(1, -1)
        h = jnp.maximum(bn(z, g.reshape(1, -1), be.reshape(1, -1)), 0.0)
    w_o, b_o = raw_params["out"]
    return jnp.dot(h.astype(matmul_dtype), w_o.astype(matmul_dtype),
                   preferred_element_type=jnp.float32) + b_o.reshape(1, -1)


def init_params(key, input_size, layer_sizes, output_size):
    """Deterministic synthetic parameters (shapes match the PyTorch module)."""
    params = {"bn0": (jnp.ones((1, input_size), jnp.float32),
                      jnp.zeros((1, input_size), jnp.float32))}
    hidden = []
    fan_in = input_size
    for h in layer_sizes:
        key, kw, kb = jax.random.split(key, 3)
        bound = 1.0 / jnp.sqrt(fan_in)
        w = jax.random.uniform(kw, (fan_in, h), jnp.float32, -bound, bound)
        b = jax.random.uniform(kb, (1, h), jnp.float32, -bound, bound)
        hidden.append((w, b, jnp.ones((1, h), jnp.float32),
                       jnp.zeros((1, h), jnp.float32)))
        fan_in = h
    params["hidden"] = hidden
    key, kw, kb = jax.random.split(key, 3)
    bound = 1.0 / jnp.sqrt(fan_in)
    params["out"] = (jax.random.uniform(kw, (fan_in, output_size), jnp.float32, -bound, bound),
                     jax.random.uniform(kb, (1, output_size), jnp.float32, -bound, bound))
    return params


if __name__ == "__main__":
    # Mlp(input_size=16, layer_sizes=[32, 32], output_size=8), batch of 20 vectors.
    batch, input_size, layer_sizes, output_size = 20, 16, [32, 32], 8

    key = jax.random.PRNGKey(0)
    key, kx = jax.random.split(key)
    x = jax.random.normal(kx, (batch, input_size), jnp.float32)
    raw_params = init_params(key, input_size, layer_sizes, output_size)
    params = prepare_params(raw_params)          # pad + cast weights ONCE

    ref = mlp_reference(x, raw_params)

    # 1) fused single-kernel fast path (default dispatch for this small model)
    fwd_fast = jax.jit(functools.partial(mlp_forward, out_dim=output_size))
    out_fast = jax.block_until_ready(fwd_fast(x, params))
    assert out_fast.shape == (batch, output_size)
    assert jnp.allclose(out_fast, ref, atol=2e-3, rtol=2e-3), "fused path mismatch"

    # 2) tiled streaming path (forced): exercises the multi-tile batch grid, the
    #    masked last tile, per-tile BN-stat partials and bf16 activation spill.
    fwd_tiled = jax.jit(functools.partial(mlp_forward, out_dim=output_size,
                                          force_tiled=True, block_rows=16))
    out_tiled = jax.block_until_ready(fwd_tiled(x, params))
    assert out_tiled.shape == (batch, output_size)
    assert jnp.allclose(out_tiled, ref, atol=5e-2, rtol=5e-2), "tiled path mismatch"

    print("KERNEL_OK")
</pallas_src>

<mosaic_0001>
module attributes {stable_mosaic.version = 11 : i64} {
  func.func @_fused_kernel(%arg0: memref<20x16xf32, #tpu.memory_space<vmem>>, %arg1: memref<1x16xf32, #tpu.memory_space<vmem>>, %arg2: memref<1x16xf32, #tpu.memory_space<vmem>>, %arg3: memref<16x128xbf16, #tpu.memory_space<vmem>>, %arg4: memref<1x128xf32, #tpu.memory_space<vmem>>, %arg5: memref<1x128xf32, #tpu.memory_space<vmem>>, %arg6: memref<1x128xf32, #tpu.memory_space<vmem>>, %arg7: memref<128x128xbf16, #tpu.memory_space<vmem>>, %arg8: memref<1x128xf32, #tpu.memory_space<vmem>>, %arg9: memref<1x128xf32, #tpu.memory_space<vmem>>, %arg10: memref<1x128xf32, #tpu.memory_space<vmem>>, %arg11: memref<128x128xbf16, #tpu.memory_space<vmem>>, %arg12: memref<1x128xf32, #tpu.memory_space<vmem>>, %arg13: memref<20x128xf32, #tpu.memory_space<vmem>>) attributes {dimension_semantics = [], scalar_prefetch = 0 : i64, scratch_operands = 0 : i64, tpu.core_type = #tpu.core_type<tc>} {
    %c0 = arith.constant 0 : index
    %c0_0 = arith.constant 0 : index
    %0 = vector.load %arg0[%c0, %c0_0] : memref<20x16xf32, #tpu.memory_space<vmem>>, vector<20x16xf32>
    %c0_1 = arith.constant 0 : index
    %c0_2 = arith.constant 0 : index
    %1 = vector.load %arg1[%c0_1, %c0_2] : memref<1x16xf32, #tpu.memory_space<vmem>>, vector<1x16xf32>
    %c0_3 = arith.constant 0 : index
    %c0_4 = arith.constant 0 : index
    %2 = vector.load %arg2[%c0_3, %c0_4] : memref<1x16xf32, #tpu.memory_space<vmem>>, vector<1x16xf32>
    %cst = arith.constant dense<0.000000e+00> : vector<16xf32>
    %3 = vector.multi_reduction <add>, %0, %cst [0] : vector<20x16xf32> to vector<16xf32>
    %4 = vector.shape_cast %3 : vector<16xf32> to vector<1x16xf32>
    %cst_5 = arith.constant 5.000000e-02 : f32
    %5 = vector.broadcast %cst_5 : f32 to vector<1x16xf32>
    %6 = arith.mulf %4, %5 : vector<1x16xf32>
    %7 = arith.mulf %0, %0 : vector<20x16xf32>
    %cst_6 = arith.constant dense<0.000000e+00> : vector<16xf32>
    %8 = vector.multi_reduction <add>, %7, %cst_6 [0] : vector<20x16xf32> to vector<16xf32>
    %9 = vector.shape_cast %8 : vector<16xf32> to vector<1x16xf32>
    %cst_7 = arith.constant 5.000000e-02 : f32
    %10 = vector.broadcast %cst_7 : f32 to vector<1x16xf32>
    %11 = arith.mulf %9, %10 : vector<1x16xf32>
    %12 = arith.mulf %6, %6 : vector<1x16xf32>
    %13 = arith.subf %11, %12 : vector<1x16xf32>
    %cst_8 = arith.constant 0.000000e+00 : f32
    %14 = vector.broadcast %cst_8 : f32 to vector<1x16xf32>
    %15 = arith.maximumf %13, %14 : vector<1x16xf32>
    %cst_9 = arith.constant 9.99999974E-6 : f32
    %16 = vector.broadcast %cst_9 : f32 to vector<1x16xf32>
    %17 = arith.addf %15, %16 : vector<1x16xf32>
    %18 = math.rsqrt %17 : vector<1x16xf32>
    %19 = arith.mulf %1, %18 : vector<1x16xf32>
    %20 = vector.broadcast %6 : vector<1x16xf32> to vector<20x16xf32>
    %21 = arith.subf %0, %20 : vector<20x16xf32>
    %22 = vector.broadcast %19 : vector<1x16xf32> to vector<20x16xf32>
    %23 = arith.mulf %21, %22 : vector<20x16xf32>
    %24 = vector.broadcast %2 : vector<1x16xf32> to vector<20x16xf32>
    %25 = arith.addf %23, %24 : vector<20x16xf32>
    %26 = arith.truncf %25 : vector<20x16xf32> to vector<20x16xbf16>
    %c0_10 = arith.constant 0 : index
    %c0_11 = arith.constant 0 : index
    %27 = vector.load %arg3[%c0_10, %c0_11] : memref<16x128xbf16, #tpu.memory_space<vmem>>, vector<16x128xbf16>
    %cst_12 = arith.constant dense<0.000000e+00> : vector<20x128xf32>
    %28 = tpu.matmul %26, %27, %cst_12 {dimension_numbers = #tpu.dot_dimension_numbers<[1], [0], [0], [1], [0, 0, 1, 1], [], []>} : vector<20x16xbf16>, vector<16x128xbf16>, vector<20x128xf32> -> vector<20x128xf32>
    %c0_13 = arith.constant 0 : index
    %c0_14 = arith.constant 0 : index
    %29 = vector.load %arg4[%c0_13, %c0_14] : memref<1x128xf32, #tpu.memory_space<vmem>>, vector<1x128xf32>
    %30 = vector.broadcast %29 : vector<1x128xf32> to vector<20x128xf32>
    %31 = arith.addf %28, %30 : vector<20x128xf32>
    %c0_15 = arith.constant 0 : index
    %c0_16 = arith.constant 0 : index
    %32 = vector.load %arg5[%c0_15, %c0_16] : memref<1x128xf32, #tpu.memory_space<vmem>>, vector<1x128xf32>
    %c0_17 = arith.constant 0 : index
    %c0_18 = arith.constant 0 : index
    %33 = vector.load %arg6[%c0_17, %c0_18] : memref<1x128xf32, #tpu.memory_space<vmem>>, vector<1x128xf32>
    %cst_19 = arith.constant dense<0.000000e+00> : vector<128xf32>
    %34 = vector.multi_reduction <add>, %31, %cst_19 [0] : vector<20x128xf32> to vector<128xf32>
    %35 = vector.shape_cast %34 : vector<128xf32> to vector<1x128xf32>
    %cst_20 = arith.constant 5.000000e-02 : f32
    %36 = vector.broadcast %cst_20 : f32 to vector<1x128xf32>
    %37 = arith.mulf %35, %36 : vector<1x128xf32>
    %38 = arith.mulf %31, %31 : vector<20x128xf32>
    %cst_21 = arith.constant dense<0.000000e+00> : vector<128xf32>
    %39 = vector.multi_reduction <add>, %38, %cst_21 [0] : vector<20x128xf32> to vector<128xf32>
    %40 = vector.shape_cast %39 : vector<128xf32> to vector<1x128xf32>
    %cst_22 = arith.constant 5.000000e-02 : f32
    %41 = vector.broadcast %cst_22 : f32 to vector<1x128xf32>
    %42 = arith.mulf %40, %41 : vector<1x128xf32>
    %43 = arith.mulf %37, %37 : vector<1x128xf32>
    %44 = arith.subf %42, %43 : vector<1x128xf32>
    %cst_23 = arith.constant 0.000000e+00 : f32
    %45 = vector.broadcast %cst_23 : f32 to vector<1x128xf32>
    %46 = arith.maximumf %44, %45 : vector<1x128xf32>
    %cst_24 = arith.constant 9.99999974E-6 : f32
    %47 = vector.broadcast %cst_24 : f32 to vector<1x128xf32>
    %48 = arith.addf %46, %47 : vector<1x128xf32>
    %49 = math.rsqrt %48 : vector<1x128xf32>
    %50 = arith.mulf %32, %49 : vector<1x128xf32>
    %51 = vector.broadcast %37 : vector<1x128xf32> to vector<20x128xf32>
    %52 = arith.subf %31, %51 : vector<20x128xf32>
    %53 = vector.broadcast %50 : vector<1x128xf32> to vector<20x128xf32>
    %54 = arith.mulf %52, %53 : vector<20x128xf32>
    %55 = vector.broadcast %33 : vector<1x128xf32> to vector<20x128xf32>
    %56 = arith.addf %54, %55 : vector<20x128xf32>
    %cst_25 = arith.constant 0.000000e+00 : f32
    %57 = vector.broadcast %cst_25 : f32 to vector<20x128xf32>
    %58 = arith.maximumf %56, %57 : vector<20x128xf32>
    %59 = arith.truncf %58 : vector<20x128xf32> to vector<20x128xbf16>
    %c0_26 = arith.constant 0 : index
    %c0_27 = arith.constant 0 : index
    %60 = vector.load %arg7[%c0_26, %c0_27] : memref<128x128xbf16, #tpu.memory_space<vmem>>, vector<128x128xbf16>
    %cst_28 = arith.constant dense<0.000000e+00> : vector<20x128xf32>
    %61 = tpu.matmul %59, %60, %cst_28 {dimension_numbers = #tpu.dot_dimension_numbers<[1], [0], [0], [1], [0, 0, 1, 1], [], []>} : vector<20x128xbf16>, vector<128x128xbf16>, vector<20x128xf32> -> vector<20x128xf32>
    %c0_29 = arith.constant 0 : index
    %c0_30 = arith.constant 0 : index
    %62 = vector.load %arg8[%c0_29, %c0_30] : memref<1x128xf32, #tpu.memory_space<vmem>>, vector<1x128xf32>
    %63 = vector.broadcast %62 : vector<1x128xf32> to vector<20x128xf32>
    %64 = arith.addf %61, %63 : vector<20x128xf32>
    %c0_31 = arith.constant 0 : index
    %c0_32 = arith.constant 0 : index
    %65 = vector.load %arg9[%c0_31, %c0_32] : memref<1x128xf32, #tpu.memory_space<vmem>>, vector<1x128xf32>
    %c0_33 = arith.constant 0 : index
    %c0_34 = arith.constant 0 : index
    %66 = vector.load %arg10[%c0_33, %c0_34] : memref<1x128xf32, #tpu.memory_space<vmem>>, vector<1x128xf32>
    %cst_35 = arith.constant dense<0.000000e+00> : vector<128xf32>
    %67 = vector.multi_reduction <add>, %64, %cst_35 [0] : vector<20x128xf32> to vector<128xf32>
    %68 = vector.shape_cast %67 : vector<128xf32> to vector<1x128xf32>
    %cst_36 = arith.constant 5.000000e-02 : f32
    %69 = vector.broadcast %cst_36 : f32 to vector<1x128xf32>
    %70 = arith.mulf %68, %69 : vector<1x128xf32>
    %71 = arith.mulf %64, %64 : vector<20x128xf32>
    %cst_37 = arith.constant dense<0.000000e+00> : vector<128xf32>
    %72 = vector.multi_reduction <add>, %71, %cst_37 [0] : vector<20x128xf32> to vector<128xf32>
    %73 = vector.shape_cast %72 : vector<128xf32> to vector<1x128xf32>
    %cst_38 = arith.constant 5.000000e-02 : f32
    %74 = vector.broadcast %cst_38 : f32 to vector<1x128xf32>
    %75 = arith.mulf %73, %74 : vector<1x128xf32>
    %76 = arith.mulf %70, %70 : vector<1x128xf32>
    %77 = arith.subf %75, %76 : vector<1x128xf32>
    %cst_39 = arith.constant 0.000000e+00 : f32
    %78 = vector.broadcast %cst_39 : f32 to vector<1x128xf32>
    %79 = arith.maximumf %77, %78 : vector<1x128xf32>
    %cst_40 = arith.constant 9.99999974E-6 : f32
    %80 = vector.broadcast %cst_40 : f32 to vector<1x128xf32>
    %81 = arith.addf %79, %80 : vector<1x128xf32>
    %82 = math.rsqrt %81 : vector<1x128xf32>
    %83 = arith.mulf %65, %82 : vector<1x128xf32>
    %84 = vector.broadcast %70 : vector<1x128xf32> to vector<20x128xf32>
    %85 = arith.subf %64, %84 : vector<20x128xf32>
    %86 = vector.broadcast %83 : vector<1x128xf32> to vector<20x128xf32>
    %87 = arith.mulf %85, %86 : vector<20x128xf32>
    %88 = vector.broadcast %66 : vector<1x128xf32> to vector<20x128xf32>
    %89 = arith.addf %87, %88 : vector<20x128xf32>
    %cst_41 = arith.constant 0.000000e+00 : f32
    %90 = vector.broadcast %cst_41 : f32 to vector<20x128xf32>
    %91 = arith.maximumf %89, %90 : vector<20x128xf32>
    %92 = arith.truncf %91 : vector<20x128xf32> to vector<20x128xbf16>
    %c0_42 = arith.constant 0 : index
    %c0_43 = arith.constant 0 : index
    %93 = vector.load %arg11[%c0_42, %c0_43] : memref<128x128xbf16, #tpu.memory_space<vmem>>, vector<128x128xbf16>
    %cst_44 = arith.constant dense<0.000000e+00> : vector<20x128xf32>
    %94 = tpu.matmul %92, %93, %cst_44 {dimension_numbers = #tpu.dot_dimension_numbers<[1], [0], [0], [1], [0, 0, 1, 1], [], []>} : vector<20x128xbf16>, vector<128x128xbf16>, vector<20x128xf32> -> vector<20x128xf32>
    %c0_45 = arith.constant 0 : index
    %c0_46 = arith.constant 0 : index
    %95 = vector.load %arg12[%c0_45, %c0_46] : memref<1x128xf32, #tpu.memory_space<vmem>>, vector<1x128xf32>
    %96 = vector.broadcast %95 : vector<1x128xf32> to vector<20x128xf32>
    %97 = arith.addf %94, %96 : vector<20x128xf32>
    %c0_47 = arith.constant 0 : index
    %c0_48 = arith.constant 0 : index
    %98 = vector.load %arg13[%c0_47, %c0_48] : memref<20x128xf32, #tpu.memory_space<vmem>>, vector<20x128xf32>
    tpu.vector_store %arg13[%c0_47, %c0_48], %97 {strides = array<i32>} : memref<20x128xf32, #tpu.memory_space<vmem>>, vector<20x128xf32>,
    return
  }
}

</mosaic_0001>

<llo_original>
// kernel: mlp_forward.1
$region0: #{mlp_forward.1}
  #allocation0 [shape = 'u32[]', space=smem, size = 0x4, offset = 0x4, fixed_abs, tag = 'smem constant byte address 0x4 - core index']
  #allocation1 [shape = 'u32[72,128]{1,0:T(1,128)}', space=vmem, size = 0x9000, scoped, tag = 'internal scratch']
  %s0 = inlined_call_operand.vmem [shape: f32[20,16], index: 0, kind: input, shape index: {}]
  %s1 = inlined_call_operand.vmem [shape: f32[1,16], index: 1, kind: input, shape index: {}]
  %s2 = inlined_call_operand.vmem [shape: f32[1,16], index: 2, kind: input, shape index: {}]
  %s3 = inlined_call_operand.vmem [shape: bf16[16,128], index: 3, kind: input, shape index: {}]
  %s4 = inlined_call_operand.vmem [shape: f32[1,128], index: 4, kind: input, shape index: {}]
  %s5 = inlined_call_operand.vmem [shape: f32[1,128], index: 5, kind: input, shape index: {}]
  %s6 = inlined_call_operand.vmem [shape: f32[1,128], index: 6, kind: input, shape index: {}]
  %s7 = inlined_call_operand.hbm [shape: bf16[128,128], index: 7, kind: input, shape index: {}]
  %s8 = inlined_call_operand.vmem [shape: f32[1,128], index: 8, kind: input, shape index: {}]
  %s9 = inlined_call_operand.vmem [shape: f32[1,128], index: 9, kind: input, shape index: {}]
  %s10 = inlined_call_operand.vmem [shape: f32[1,128], index: 10, kind: input, shape index: {}]
  %s11 = inlined_call_operand.hbm [shape: bf16[128,128], index: 11, kind: input, shape index: {}]
  %s12 = inlined_call_operand.vmem [shape: f32[1,128], index: 12, kind: input, shape index: {}]
  %s13 = inlined_call_operand.vmem [shape: f32[20,128], index: 13, kind: output, shape index: {}]
  %s14 = sld [smem:[#allocation0]]
  $region70: #{mlp_forward.1} parent=0
    _
  %s16 = ssub.s32 1, %s14
  %s17 = scalar_select 0, %s16, %s14
  $region1: #{mlp_forward.1} parent=0
    #allocation2 [shape = 'u8[32768]{0}', space=vmem, size = 0x8000, scoped, tag = 'input window, operand 7, single buffered']
    #allocation3 [shape = 's32[1]{0}', space=sflag, size = 0x4, scoped, tag = 'scoped memory for mlp_forward.1']
    #allocation4 [shape = 'u8[32768]{0}', space=vmem, size = 0x8000, scoped, tag = 'input window, operand 11, single buffered']
    #allocation5 [shape = 's32[1]{0}', space=sflag, size = 0x4, scoped, tag = 'scoped memory for mlp_forward.1']
    %18 = vsyncpa [#allocation3], 0
    %19 = vsyncpa [#allocation5], 0
    // Predicated region
    $region2: #{mlp_forward.1} parent=1 // pred_check
      _
    $region3: #{mlp_forward.1} parent=1 // pred_check_branch
      %21 = sbr.rel (0) target = $region5
    $region4: #{mlp_forward.1} parent=1 // pred_region
      _
    $region5: #{mlp_forward.1} parent=1 // pred_fallthru
      _
    // Predicated region
    $region6: #{mlp_forward.1} parent=1 // pred_check
      _
    $region7: #{mlp_forward.1} parent=1 // pred_check_branch
      %23 = sbr.rel (0) target = $region9
    $region8: #{mlp_forward.1} parent=1 // pred_region
      _
    $region9: #{mlp_forward.1} parent=1 // pred_fallthru
      _
    // Predicated region
    $region10: #{mlp_forward.1} parent=1 // pred_check
      _
    $region11: #{mlp_forward.1} parent=1 // pred_check_branch
      %25 = sbr.rel (0) target = $region13
    $region12: #{mlp_forward.1} parent=1 // pred_region
      _
    $region13: #{mlp_forward.1} parent=1 // pred_fallthru
      _
    // Predicated region
    $region14: #{mlp_forward.1} parent=1 // pred_check
      _
    $region15: #{mlp_forward.1} parent=1 // pred_check_branch
      %27 = sbr.rel (0) target = $region17
    $region16: #{mlp_forward.1} parent=1 // pred_region
      _
    $region17: #{mlp_forward.1} parent=1 // pred_fallthru
      _
    // Predicated region
    $region18: #{mlp_forward.1} parent=1 // pred_check
      _
    $region19: #{mlp_forward.1} parent=1 // pred_check_branch
      %29 = sbr.rel (0) target = $region21
    $region20: #{mlp_forward.1} parent=1 // pred_region
      _
    $region21: #{mlp_forward.1} parent=1 // pred_fallthru
      _
    // Predicated region
    $region22: #{mlp_forward.1} parent=1 // pred_check
      _
    $region23: #{mlp_forward.1} parent=1 // pred_check_branch
      %31 = sbr.rel (0) target = $region25
    $region24: #{mlp_forward.1} parent=1 // pred_region
      _
    $region25: #{mlp_forward.1} parent=1 // pred_fallthru
      _
    // Predicated region
    $region26: #{mlp_forward.1} parent=1 // pred_check
      _
    $region27: #{mlp_forward.1} parent=1 // pred_check_branch
      %33 = sbr.rel (0) target = $region29
    $region28: #{mlp_forward.1} parent=1 // pred_region
      _
    $region29: #{mlp_forward.1} parent=1 // pred_fallthru
      _
    // Predicated region
    $region30: #{mlp_forward.1} parent=1 // pred_check
      _
    $region31: #{mlp_forward.1} parent=1 // pred_check_branch
      %35 = sbr.rel (0) target = $region33
    $region32: #{mlp_forward.1} parent=1 // pred_region
      %37 = vsyncadd [#allocation3], 0
      %s38 = sshll.u32 %s7, 4
      %s39 = int_to_ptr.hbm [resolvable:$true] %s38
      %s40 = sshll.u32 [#allocation2], 4
      %s41 = int_to_ptr.vmem [resolvable:$true] %s40
      %46 = dma.hbm_to_vmem [thread:$0]  %s39, 1024, %s41, [#allocation3], 64, 64, 4
    $region33: #{mlp_forward.1} parent=1 // pred_fallthru
      _
    // Predicated region
    $region34: #{mlp_forward.1} parent=1 // pred_check
      _
    $region35: #{mlp_forward.1} parent=1 // pred_check_branch
      %48 = sbr.rel (0) target = $region37
    $region36: #{mlp_forward.1} parent=1 // pred_region
      _
    $region37: #{mlp_forward.1} parent=1 // pred_fallthru
      _
    // Predicated region
    $region38: #{mlp_forward.1} parent=1 // pred_check
      _
    $region39: #{mlp_forward.1} parent=1 // pred_check_branch
      %50 = sbr.rel (0) target = $region41
    $region40: #{mlp_forward.1} parent=1 // pred_region
      _
    $region41: #{mlp_forward.1} parent=1 // pred_fallthru
      _
    // Predicated region
    $region42: #{mlp_forward.1} parent=1 // pred_check
      _
    $region43: #{mlp_forward.1} parent=1 // pred_check_branch
      %52 = sbr.rel (0) target = $region45
    $region44: #{mlp_forward.1} parent=1 // pred_region
      _
    $region45: #{mlp_forward.1} parent=1 // pred_fallthru
      _
    // Predicated region
    $region46: #{mlp_forward.1} parent=1 // pred_check
      _
    $region47: #{mlp_forward.1} parent=1 // pred_check_branch
      %54 = sbr.rel (0) target = $region49
    $region48: #{mlp_forward.1} parent=1 // pred_region
      %56 = vsyncadd [#allocation5], 0
      %s57 = sshll.u32 %s11, 4
      %s58 = int_to_ptr.hbm [resolvable:$true] %s57
      %s59 = sshll.u32 [#allocation4], 4
      %s60 = int_to_ptr.vmem [resolvable:$true] %s59
      %65 = dma.hbm_to_vmem [thread:$0]  %s58, 1024, %s60, [#allocation5], 64, 64, 4
    $region49: #{mlp_forward.1} parent=1 // pred_fallthru
      _
    // Predicated region
    $region50: #{mlp_forward.1} parent=1 // pred_check
      _
    $region51: #{mlp_forward.1} parent=1 // pred_check_branch
      %67 = sbr.rel (0) target = $region53
    $region52: #{mlp_forward.1} parent=1 // pred_region
      _
    $region53: #{mlp_forward.1} parent=1 // pred_fallthru
      _
    // Predicated region
    $region54: #{mlp_forward.1} parent=1 // pred_check
      _
    $region55: #{mlp_forward.1} parent=1 // pred_check_branch
      %69 = sbr.rel (0) target = $region57
    $region56: #{mlp_forward.1} parent=1 // pred_region
      %71 = dma.done [#allocation3], 1024
    $region57: #{mlp_forward.1} parent=1 // pred_fallthru
      _
    // Predicated region
    $region58: #{mlp_forward.1} parent=1 // pred_check
      _
    $region59: #{mlp_forward.1} parent=1 // pred_check_branch
      %73 = sbr.rel (0) target = $region61
    $region60: #{mlp_forward.1} parent=1 // pred_region
      %75 = dma.done [#allocation5], 1024
    $region61: #{mlp_forward.1} parent=1 // pred_fallthru
      _
    %v77 = vld [vmem:[%s0] sm:$0xff]
    %v78 = vld [vmem:[%s0 + $0x8] sm:$0xff]
    %v79 = vld [vmem:[%s0 + $0x10] sm:$0xf]
    %v80 = vld [vmem:[%s1] sm:$0x1]
    %v81 = vld [vmem:[%s2] sm:$0x1]
    %vm82 = vcmask 130048
    %v83 = vsel %vm82, %v77, 0.0
    %v84 = vsel %vm82, %v78, 0.0
    %v85 = vadd.f32 %v83, %v84
    %vm86 = vcmask 125952
    %v87 = vsel %vm86, %v79, 0.0
    %v88 = vadd.f32 %v85, %v87
    %v89 = vrot.slane %v88, 4
    %v90 = vadd.f32 %v88, %v89
    %v91 = vrot.slane %v90, 2
    %v92 = vadd.f32 %v90, %v91
    %v93 = vrot.slane %v92, 1
    %v94 = vadd.f32 %v92, %v93
    %v95 = vmul.f32 %v94, 0.05
    %v96 = vmul.f32 %v77, %v77
    %v97 = vmul.f32 %v78, %v78
    %v98 = vmul.f32 %v79, %v79
    %v99 = vsel %vm82, %v96, 0.0
    %v100 = vsel %vm82, %v97, 0.0
    %v101 = vadd.f32 %v99, %v100
    %v102 = vsel %vm86, %v98, 0.0
    %v103 = vadd.f32 %v101, %v102
    %v104 = vrot.slane %v103, 4
    %v105 = vadd.f32 %v103, %v104
    %v106 = vrot.slane %v105, 2
    %v107 = vadd.f32 %v105, %v106
    %v108 = vrot.slane %v107, 1
    %v109 = vadd.f32 %v107, %v108
    %v110 = vmul.f32 %v109, 0.05
    %v111 = vmul.f32 %v95, %v95
    %v112 = vsub.f32 %v110, %v111
    %v113 = vmax.f32 %v112, 0.0
    %v114 = vadd.f32 %v113, 1e-05
    %v115 = vrsqrt.pop %v114
    %v116 = vmul.f32 %v115, %v114
    %v117 = vmul.f32 %v116, %v115
    %v118 = vmul.f32 0.5, %v117
    %v119 = vsub.f32 1.5, %v118
    %v120 = vmul.f32 %v115, %v119
    %vm121 = vweird.f32 %v114
    %vm122 = vweird.f32 %v115
    %vm123 = vmor %vm121, %vm122
    %v124 = vsel %vm123, %v115, %v120
    %v125 = vmul.f32 %v80, %v124
    %v126 = vsub.f32 %v77, %v95
    %v127 = vsub.f32 %v78, %v95
    %v128 = vsub.f32 %v79, %v95
    %v130 = vperm.slane %v125, 0
    %v132 = vmul.f32 %v126, %v130
    %v133 = vmul.f32 %v127, %v130
    %v134 = vmul.f32 %v128, %v130
    %v136 = vperm.slane %v81, 0
    %v138 = vadd.f32 %v132, %v136
    %v139 = vadd.f32 %v133, %v136
    %v140 = vadd.f32 %v134, %v136
    %v141 = vpack.c.bf16 %v139, %v138
    %v142 = vpack.c.bf16 %v140, %v140
    %v143 = vld [vmem:[%s3] sm:$0xf]
    %v144 = vld [vmem:[%s3 + $0x4] sm:$0xf]
    %v145 = vld [vmem:[%s4] sm:$0x1]
    %v147 = vperm.slane %v145, 0
    %v151 = vunpack.c.l.b16 %v143
    %v152 = vunpack.c.l.b16 %v144
    %v153 = vpack.c.b16 %v152, %v151
    %v156 = vsel %vm82, %v141, 0
    %v159 = vsel %vm82, %v142, 0
    %161 = vmatpush.bf16.msra.mxu0 0
    %162 = vmatpush.bf16.msra.mxu0 0
    %163 = vmatpush.bf16.msra.mxu0 0
    %164 = vmatpush.bf16.msra.mxu0 0
    %165 = vmatpush.bf16.msra.mxu0 0
    %166 = vmatpush.bf16.msra.mxu0 0
    %167 = vmatpush.bf16.msra.mxu0 0
    %168 = vmatpush.bf16.msra.mxu0 %v153
    %169 = vmatmul.bf16.gmra.mxu0 %v156
    %v170 = vpop.f32.mrf.mxu0
    %v171 = vadd.f32 %v147, %v170
    %v172 = vpop.f32.mrf.mxu0
    %v173 = vadd.f32 %v147, %v172
    %174 = vmatmul.bf16.gmra.mxu0 %v159
    %v175 = vpop.f32.mrf.mxu0
    %v176 = vadd.f32 %v147, %v175
    %v177 = vpop.f32.mrf.mxu0
    %178 = vdwg.mxu0
    %v179 = vld [vmem:[%s5] sm:$0x1]
    %v180 = vld [vmem:[%s6] sm:$0x1]
    %v181 = vadd.f32 %v171, %v173
    %vm182 = vcmask 1043456
    %v183 = vsel %vm182, %v176, 0.0
    %v184 = vadd.f32 %v181, %v183
    %v185 = vrot.slane %v184, 4
    %v186 = vadd.f32 %v184, %v185
    %v187 = vrot.slane %v186, 2
    %v188 = vadd.f32 %v186, %v187
    %v189 = vrot.slane %v188, 1
    %v190 = vadd.f32 %v188, %v189
    %v191 = vmul.f32 %v190, 0.05
    %v192 = vmul.f32 %v171, %v171
    %v193 = vmul.f32 %v173, %v173
    %v194 = vmul.f32 %v176, %v176
    %v195 = vadd.f32 %v192, %v193
    %v196 = vsel %vm182, %v194, 0.0
    %v197 = vadd.f32 %v195, %v196
    %v198 = vrot.slane %v197, 4
    %v199 = vadd.f32 %v197, %v198
    %v200 = vrot.slane %v199, 2
    %v201 = vadd.f32 %v199, %v200
    %v202 = vrot.slane %v201, 1
    %v203 = vadd.f32 %v201, %v202
    %v204 = vmul.f32 %v203, 0.05
    %v205 = vmul.f32 %v191, %v191
    %v206 = vsub.f32 %v204, %v205
    %v207 = vmax.f32 %v206, 0.0
    %v208 = vadd.f32 %v207, 1e-05
    %v209 = vrsqrt.pop %v208
    %v210 = vmul.f32 %v209, %v208
    %v211 = vmul.f32 %v210, %v209
    %v212 = vmul.f32 0.5, %v211
    %v213 = vsub.f32 1.5, %v212
    %v214 = vmul.f32 %v209, %v213
    %vm215 = vweird.f32 %v208
    %vm216 = vweird.f32 %v209
    %vm217 = vmor %vm215, %vm216
    %v218 = vsel %vm217, %v209, %v214
    %v219 = vmul.f32 %v179, %v218
    %v220 = vsub.f32 %v171, %v191
    %v221 = vsub.f32 %v173, %v191
    %v222 = vsub.f32 %v176, %v191
    %v224 = vperm.slane %v219, 0
    %v226 = vmul.f32 %v220, %v224
    %v227 = vmul.f32 %v221, %v224
    %v228 = vmul.f32 %v222, %v224
    %v230 = vperm.slane %v180, 0
    %v232 = vadd.f32 %v226, %v230
    %v233 = vadd.f32 %v227, %v230
    %v234 = vadd.f32 %v228, %v230
    %v235 = vmax.f32 %v232, 0.0
    %v236 = vmax.f32 %v233, 0.0
    %v237 = vmax.f32 %v234, 0.0
    %v238 = vpack.c.bf16 %v236, %v235
    %v239 = vpack.c.bf16 %v237, %v237
    %v240 = vld [vmem:[#allocation2] sm:$0xf]
    %v241 = vld [vmem:[#allocation2 + $0x4] sm:$0xf]
    %v242 = vld [vmem:[#allocation2 + $0x8] sm:$0xf]
    %v243 = vld [vmem:[#allocation2 + $0xc] sm:$0xf]
    %v244 = vld [vmem:[#allocation2 + $0x10] sm:$0xf]
    %v245 = vld [vmem:[#allocation2 + $0x14] sm:$0xf]
    %v246 = vld [vmem:[#allocation2 + $0x18] sm:$0xf]
    %v247 = vld [vmem:[#allocation2 + $0x1c] sm:$0xf]
    %v248 = vld [vmem:[#allocation2 + $0x20] sm:$0xf]
    %v249 = vld [vmem:[#allocation2 + $0x24] sm:$0xf]
    %v250 = vld [vmem:[#allocation2 + $0x28] sm:$0xf]
    %v251 = vld [vmem:[#allocation2 + $0x2c] sm:$0xf]
    %v252 = vld [vmem:[#allocation2 + $0x30] sm:$0xf]
    %v253 = vld [vmem:[#allocation2 + $0x34] sm:$0xf]
    %v254 = vld [vmem:[#allocation2 + $0x38] sm:$0xf]
    %v255 = vld [vmem:[#allocation2 + $0x3c] sm:$0xf]
    %v256 = vld [vmem:[%s8] sm:$0x1]
    %v258 = vperm.slane %v256, 0
    %v276 = vunpack.c.l.b16 %v240
    %v277 = vunpack.c.l.b16 %v241
    %v278 = vunpack.c.l.b16 %v242
    %v279 = vunpack.c.l.b16 %v243
    %v280 = vunpack.c.l.b16 %v244
    %v281 = vunpack.c.l.b16 %v245
    %v282 = vunpack.c.l.b16 %v246
    %v283 = vunpack.c.l.b16 %v247
    %v284 = vunpack.c.l.b16 %v248
    %v285 = vunpack.c.l.b16 %v249
    %v286 = vunpack.c.l.b16 %v250
    %v287 = vunpack.c.l.b16 %v251
    %v288 = vunpack.c.l.b16 %v252
    %v289 = vunpack.c.l.b16 %v253
    %v290 = vunpack.c.l.b16 %v254
    %v291 = vunpack.c.l.b16 %v255
    %v292 = vpack.c.b16 %v277, %v276
    %v293 = vpack.c.b16 %v279, %v278
    %v294 = vpack.c.b16 %v281, %v280
    %v295 = vpack.c.b16 %v283, %v282
    %v296 = vpack.c.b16 %v285, %v284
    %v297 = vpack.c.b16 %v287, %v286
    %v298 = vpack.c.b16 %v289, %v288
    %v299 = vpack.c.b16 %v291, %v290
    %308 = vmatpush.bf16.msra.mxu0 %v299
    %309 = vmatpush.bf16.msra.mxu0 %v298
    %310 = vmatpush.bf16.msra.mxu0 %v297
    %311 = vmatpush.bf16.msra.mxu0 %v296
    %312 = vmatpush.bf16.msra.mxu0 %v295
    %313 = vmatpush.bf16.msra.mxu0 %v294
    %314 = vmatpush.bf16.msra.mxu0 %v293
    %315 = vmatpush.bf16.msra.mxu0 %v292
    %316 = vmatmul.bf16.gmra.mxu0 %v238
    %v317 = vpop.f32.mrf.mxu0
    %v318 = vadd.f32 %v258, %v317
    %v319 = vpop.f32.mrf.mxu0
    %v320 = vadd.f32 %v258, %v319
    %321 = vmatmul.bf16.gmra.mxu0 %v239
    %v322 = vpop.f32.mrf.mxu0
    %v323 = vadd.f32 %v258, %v322
    %v324 = vpop.f32.mrf.mxu0
    %325 = vdwg.mxu0
    %v326 = vld [vmem:[%s9] sm:$0x1]
    %v327 = vld [vmem:[%s10] sm:$0x1]
    %v328 = vadd.f32 %v318, %v320
    %v329 = vsel %vm182, %v323, 0.0
    %v330 = vadd.f32 %v328, %v329
    %v331 = vrot.slane %v330, 4
    %v332 = vadd.f32 %v330, %v331
    %v333 = vrot.slane %v332, 2
    %v334 = vadd.f32 %v332, %v333
    %v335 = vrot.slane %v334, 1
    %v336 = vadd.f32 %v334, %v335
    %v337 = vmul.f32 %v336, 0.05
    %v338 = vmul.f32 %v318, %v318
    %v339 = vmul.f32 %v320, %v320
    %v340 = vmul.f32 %v323, %v323
    %v341 = vadd.f32 %v338, %v339
    %v342 = vsel %vm182, %v340, 0.0
    %v343 = vadd.f32 %v341, %v342
    %v344 = vrot.slane %v343, 4
    %v345 = vadd.f32 %v343, %v344
    %v346 = vrot.slane %v345, 2
    %v347 = vadd.f32 %v345, %v346
    %v348 = vrot.slane %v347, 1
    %v349 = vadd.f32 %v347, %v348
    %v350 = vmul.f32 %v349, 0.05
    %v351 = vmul.f32 %v337, %v337
    %v352 = vsub.f32 %v350, %v351
    %v353 = vmax.f32 %v352, 0.0
    %v354 = vadd.f32 %v353, 1e-05
    %v355 = vrsqrt.pop %v354
    %v356 = vmul.f32 %v355, %v354
    %v357 = vmul.f32 %v356, %v355
    %v358 = vmul.f32 0.5, %v357
    %v359 = vsub.f32 1.5, %v358
    %v360 = vmul.f32 %v355, %v359
    %vm361 = vweird.f32 %v354
    %vm362 = vweird.f32 %v355
    %vm363 = vmor %vm361, %vm362
    %v364 = vsel %vm363, %v355, %v360
    %v365 = vmul.f32 %v326, %v364
    %v366 = vsub.f32 %v318, %v337
    %v367 = vsub.f32 %v320, %v337
    %v368 = vsub.f32 %v323, %v337
    %v370 = vperm.slane %v365, 0
    %v372 = vmul.f32 %v366, %v370
    %v373 = vmul.f32 %v367, %v370
    %v374 = vmul.f32 %v368, %v370
    %v376 = vperm.slane %v327, 0
    %v378 = vadd.f32 %v372, %v376
    %v379 = vadd.f32 %v373, %v376
    %v380 = vadd.f32 %v374, %v376
    %v381 = vmax.f32 %v378, 0.0
    %v382 = vmax.f32 %v379, 0.0
    %v383 = vmax.f32 %v380, 0.0
    %v384 = vpack.c.bf16 %v382, %v381
    %v385 = vpack.c.bf16 %v383, %v383
    %v386 = vld [vmem:[#allocation4] sm:$0xf]
    %v387 = vld [vmem:[#allocation4 + $0x4] sm:$0xf]
    %v388 = vld [vmem:[#allocation4 + $0x8] sm:$0xf]
    %v389 = vld [vmem:[#allocation4 + $0xc] sm:$0xf]
    %v390 = vld [vmem:[#allocation4 + $0x10] sm:$0xf]
    %v391 = vld [vmem:[#allocation4 + $0x14] sm:$0xf]
    %v392 = vld [vmem:[#allocation4 + $0x18] sm:$0xf]
    %v393 = vld [vmem:[#allocation4 + $0x1c] sm:$0xf]
    %v394 = vld [vmem:[#allocation4 + $0x20] sm:$0xf]
    %v395 = vld [vmem:[#allocation4 + $0x24] sm:$0xf]
    %v396 = vld [vmem:[#allocation4 + $0x28] sm:$0xf]
    %v397 = vld [vmem:[#allocation4 + $0x2c] sm:$0xf]
    %v398 = vld [vmem:[#allocation4 + $0x30] sm:$0xf]
    %v399 = vld [vmem:[#allocation4 + $0x34] sm:$0xf]
    %v400 = vld [vmem:[#allocation4 + $0x38] sm:$0xf]
    %v401 = vld [vmem:[#allocation4 + $0x3c] sm:$0xf]
    %v402 = vld [vmem:[%s12] sm:$0x1]
    %v404 = vperm.slane %v402, 0
    %v422 = vunpack.c.l.b16 %v386
    %v423 = vunpack.c.l.b16 %v387
    %v424 = vunpack.c.l.b16 %v388
    %v425 = vunpack.c.l.b16 %v389
    %v426 = vunpack.c.l.b16 %v390
    %v427 = vunpack.c.l.b16 %v391
    %v428 = vunpack.c.l.b16 %v392
    %v429 = vunpack.c.l.b16 %v393
    %v430 = vunpack.c.l.b16 %v394
    %v431 = vunpack.c.l.b16 %v395
    %v432 = vunpack.c.l.b16 %v396
    %v433 = vunpack.c.l.b16 %v397
    %v434 = vunpack.c.l.b16 %v398
    %v435 = vunpack.c.l.b16 %v399
    %v436 = vunpack.c.l.b16 %v400
    %v437 = vunpack.c.l.b16 %v401
    %v438 = vpack.c.b16 %v423, %v422
    %v439 = vpack.c.b16 %v425, %v424
    %v440 = vpack.c.b16 %v427, %v426
    %v441 = vpack.c.b16 %v429, %v428
    %v442 = vpack.c.b16 %v431, %v430
    %v443 = vpack.c.b16 %v433, %v432
    %v444 = vpack.c.b16 %v435, %v434
    %v445 = vpack.c.b16 %v437, %v436
    %454 = vmatpush.bf16.msra.mxu0 %v445
    %455 = vmatpush.bf16.msra.mxu0 %v444
    %456 = vmatpush.bf16.msra.mxu0 %v443
    %457 = vmatpush.bf16.msra.mxu0 %v442
    %458 = vmatpush.bf16.msra.mxu0 %v441
    %459 = vmatpush.bf16.msra.mxu0 %v440
    %460 = vmatpush.bf16.msra.mxu0 %v439
    %461 = vmatpush.bf16.msra.mxu0 %v438
    %462 = vmatmul.bf16.gmra.mxu0 %v384
    %v463 = vpop.f32.mrf.mxu0
    %v464 = vadd.f32 %v404, %v463
    %v465 = vpop.f32.mrf.mxu0
    %v466 = vadd.f32 %v404, %v465
    %467 = vmatmul.bf16.gmra.mxu0 %v385
    %v468 = vpop.f32.mrf.mxu0
    %v469 = vadd.f32 %v404, %v468
    %v470 = vpop.f32.mrf.mxu0
    %471 = vdwg.mxu0
    %472 = vst [vmem:[%s13] sm:$0xff] %v464
    %473 = vst [vmem:[%s13 + $0x8] sm:$0xff] %v466
    %474 = vst [vmem:[%s13 + $0x10] sm:$0xf] %v469
    // Predicated region
    $region62: #{mlp_forward.1} parent=1 // pred_check
      _
    $region63: #{mlp_forward.1} parent=1 // pred_check_branch
      %476 = sbr.rel (0) target = $region65
    $region64: #{mlp_forward.1} parent=1 // pred_region
      _
    $region65: #{mlp_forward.1} parent=1 // pred_fallthru
      _
    // Predicated region
    $region66: #{mlp_forward.1} parent=1 // pred_check
      _
    $region67: #{mlp_forward.1} parent=1 // pred_check_branch
      %478 = sbr.rel (0) target = $region69
    $region68: #{mlp_forward.1} parent=1 // pred_region
      _
    $region69: #{mlp_forward.1} parent=1 // pred_fallthru
      _
    %479 = vsyncpa [#allocation3], 1
    %480 = vsyncpa [#allocation5], 1

</llo_original>
